<compile_context>
chip_gen: v5e
topology: v5e:2x2
jax: 0.10.0
libtpu: 0.0.40
codegen_flags: <defaults>
</compile_context>

<pallas_src>
import functools

import jax
import jax.numpy as jnp
from jax.experimental import pallas as pl
from jax.experimental.pallas import tpu as pltpu


def _round_up(a: int, b: int) -> int:
    return (a + b - 1) // b * b


def _mlp_kernel(seed_ref, x_ref, w1_ref, b1_ref, w2_ref, b2_ref, o_ref, *,
                dropout_p, training, tb, h_pad):
    # hidden1: (TB, D) @ (D, Hpad) + (1, Hpad) -- bf16 MXU operands, f32 accumulation.
    x = x_ref[...].astype(jnp.bfloat16)
    h = jnp.dot(x, w1_ref[...], preferred_element_type=jnp.float32)
    h = h + b1_ref[...]

    # leaky_relu (default negative_slope = 0.01), kept in f32 on the VPU.
    h = jnp.where(h > 0, h, 0.01 * h)

    # dropout(p), inverted scaling.  Counter-based hash over the global element index
    # so each batch tile gets an independent mask (no pltpu.prng_* needed).
    if training and dropout_p > 0.0:
        tile = pl.program_id(0).astype(jnp.uint32)
        row = jax.lax.broadcasted_iota(jnp.int32, h.shape, 0).astype(jnp.uint32)
        col = jax.lax.broadcasted_iota(jnp.int32, h.shape, 1).astype(jnp.uint32)
        gidx = (tile * jnp.uint32(tb) + row) * jnp.uint32(h_pad) + col
        seed_u = seed_ref[0].astype(jnp.uint32)
        # lowbias32-style integer mix (wraparound uint32 arithmetic).
        z = gidx + seed_u * jnp.uint32(0x9E3779B9)
        z = z ^ (z >> 16)
        z = z * jnp.uint32(0x7FEB352D)
        z = z ^ (z >> 15)
        z = z * jnp.uint32(0x846CA68B)
        z = z ^ (z >> 16)
        bits24 = z & jnp.uint32(0x00FFFFFF)
        thresh = jnp.uint32(round(dropout_p * float(1 << 24)))
        scale = jnp.float32(1.0 / (1.0 - dropout_p))
        # single multiply by a {0, 1/(1-p)} mask
        h = h * jnp.where(bits24 >= thresh, scale, jnp.float32(0.0))

    # out: (TB, Hpad) @ (Hpad, Cpad) + (1, Cpad)
    y = jnp.dot(h.astype(jnp.bfloat16), w2_ref[...], preferred_element_type=jnp.float32)
    o_ref[...] = y + b2_ref[...]


def mlp_forward(x, w1, b1, w2, b2, seed, *, dropout_p=0.2, training=True,
                batch_tile=512):
    """x: (B, ...) -> flattened to (B, D). Returns (B, nr_classes) float32."""
    x = x.astype(jnp.float32)              # torch: x = x.float()
    B = x.shape[0]
    x2 = x.reshape(B, -1)                  # torch: x.view(x.size(0), -1)
    D = x2.shape[1]
    H = w1.shape[1]
    C = w2.shape[1]
    assert w1.shape == (D, H) and w2.shape == (H, C)
    assert b1.shape == (H,) and b2.shape == (C,)

    LANE = 128
    H_pad = _round_up(H, LANE)
    C_pad = _round_up(C, LANE)

    # Batch tiling: stream x in (TB, D) tiles; pad B so the grid divides evenly.
    # TB=512 keeps the double-buffered x tile well under VMEM on v5e/v6e and v7x.
    if B <= batch_tile:
        TB = _round_up(max(B, 1), 8)
        B_pad = TB
    else:
        TB = batch_tile
        B_pad = _round_up(B, TB)
    n_tiles = B_pad // TB

    x_p = jnp.pad(x2, ((0, B_pad - B), (0, 0)))
    # Zero-padded, bf16 weights (resident in VMEM across the whole grid); f32 biases.
    w1_p = jnp.pad(w1.astype(jnp.bfloat16), ((0, 0), (0, H_pad - H)))
    w2_p = jnp.pad(w2.astype(jnp.bfloat16), ((0, H_pad - H), (0, C_pad - C)))
    b1_p = jnp.pad(b1.astype(jnp.float32), (0, H_pad - H)).reshape(1, H_pad)
    b2_p = jnp.pad(b2.astype(jnp.float32), (0, C_pad - C)).reshape(1, C_pad)
    seed_arr = jnp.asarray([seed], dtype=jnp.int32)

    kernel = functools.partial(_mlp_kernel, dropout_p=dropout_p,
                               training=training, tb=TB, h_pad=H_pad)

    out_p = pl.pallas_call(
        kernel,
        out_shape=jax.ShapeDtypeStruct((B_pad, C_pad), jnp.float32),
        grid=(n_tiles,),
        in_specs=[
            pl.BlockSpec(memory_space=pltpu.MemorySpace.SMEM),   # seed (1,)
            pl.BlockSpec((TB, D), lambda i: (i, 0)),             # x tile (streamed)
            pl.BlockSpec((D, H_pad), lambda i: (0, 0)),          # w1 (resident)
            pl.BlockSpec((1, H_pad), lambda i: (0, 0)),          # b1 (resident)
            pl.BlockSpec((H_pad, C_pad), lambda i: (0, 0)),      # w2 (resident)
            pl.BlockSpec((1, C_pad), lambda i: (0, 0)),          # b2 (resident)
        ],
        out_specs=pl.BlockSpec((TB, C_pad), lambda i: (i, 0)),
        compiler_params=pltpu.CompilerParams(
            dimension_semantics=("parallel",)),
    )(seed_arr, x_p, w1_p, b1_p, w2_p, b2_p)

    return out_p[:B, :C]


def init_params(key, d, hidden_d, nr_classes):
    """Deterministic init matching nn.Linear's U(-1/sqrt(fan_in), 1/sqrt(fan_in))."""
    k1, k2, k3, k4 = jax.random.split(key, 4)
    lim1 = 1.0 / (d ** 0.5)
    lim2 = 1.0 / (hidden_d ** 0.5)
    w1 = jax.random.uniform(k1, (d, hidden_d), jnp.float32, -lim1, lim1)
    b1 = jax.random.uniform(k2, (hidden_d,), jnp.float32, -lim1, lim1)
    w2 = jax.random.uniform(k3, (hidden_d, nr_classes), jnp.float32, -lim2, lim2)
    b2 = jax.random.uniform(k4, (nr_classes,), jnp.float32, -lim2, lim2)
    return w1, b1, w2, b2


if __name__ == "__main__":
    key = jax.random.PRNGKey(0)
    kx, kp = jax.random.split(key)

    # Small shapes consistent with the module: x is (B, C, H, W), flattened -> d = C*H*W.
    B, C_img, H_img, W_img = 2, 4, 16, 16
    d = C_img * H_img * W_img      # 1024
    hidden_d = 32
    nr_classes = 10

    x = jax.random.normal(kx, (B, C_img, H_img, W_img), jnp.float32)
    w1, b1, w2, b2 = init_params(kp, d, hidden_d, nr_classes)

    # Train-mode forward (dropout active, matching nn.Module's default training=True).
    out = mlp_forward(x, w1, b1, w2, b2, seed=0, dropout_p=0.2, training=True)
    out = jax.block_until_ready(out)
    assert out.shape == (B, nr_classes) and out.dtype == jnp.float32
    assert bool(jnp.all(jnp.isfinite(out)))

    # Eval-mode check against a plain-JAX reference using the same bf16-operand /
    # f32-accumulate matmul recipe (dropout = identity in eval mode).
    out_eval = jax.block_until_ready(
        mlp_forward(x, w1, b1, w2, b2, seed=0, dropout_p=0.2, training=False))
    xf = x.reshape(B, -1)
    h_ref = jnp.dot(xf.astype(jnp.bfloat16), w1.astype(jnp.bfloat16),
                    preferred_element_type=jnp.float32) + b1
    h_ref = jnp.where(h_ref > 0, h_ref, 0.01 * h_ref)
    ref = jnp.dot(h_ref.astype(jnp.bfloat16), w2.astype(jnp.bfloat16),
                  preferred_element_type=jnp.float32) + b2
    assert jnp.allclose(out_eval, ref, atol=2e-2, rtol=2e-2), (
        float(jnp.max(jnp.abs(out_eval - ref))))

    print("KERNEL_OK")
</pallas_src>

<mosaic_0001>
module attributes {stable_mosaic.version = 11 : i64} {
  func.func @_mlp_kernel(%arg0: i32, %arg1: memref<1xi32, #tpu.memory_space<smem>>, %arg2: memref<8x1024xf32, #tpu.memory_space<vmem>>, %arg3: memref<1024x128xbf16, #tpu.memory_space<vmem>>, %arg4: memref<1x128xf32, #tpu.memory_space<vmem>>, %arg5: memref<128x128xbf16, #tpu.memory_space<vmem>>, %arg6: memref<1x128xf32, #tpu.memory_space<vmem>>, %arg7: memref<8x128xf32, #tpu.memory_space<vmem>>) attributes {dimension_semantics = [#tpu.dimension_semantics<parallel>], iteration_bounds = array<i64: 1>, scalar_prefetch = 0 : i64, scratch_operands = 0 : i64, tpu.core_type = #tpu.core_type<tc>, window_params = [{transform_indices = @transform_0, window_bounds = array<i64: 1>}, {transform_indices = @transform_1, window_bounds = array<i64: 8, 1024>}, {pipeline_mode = #tpu.pipeline_mode<synchronous>, transform_indices = @transform_2, window_bounds = array<i64: 1024, 128>}, {pipeline_mode = #tpu.pipeline_mode<synchronous>, transform_indices = @transform_3, window_bounds = array<i64: 1, 128>}, {pipeline_mode = #tpu.pipeline_mode<synchronous>, transform_indices = @transform_4, window_bounds = array<i64: 128, 128>}, {pipeline_mode = #tpu.pipeline_mode<synchronous>, transform_indices = @transform_5, window_bounds = array<i64: 1, 128>}, {transform_indices = @transform_6, window_bounds = array<i64: 8, 128>}]} {
    %c0 = arith.constant 0 : index
    %c0_0 = arith.constant 0 : index
    %0 = vector.load %arg2[%c0, %c0_0] : memref<8x1024xf32, #tpu.memory_space<vmem>>, vector<8x1024xf32>
    %1 = arith.truncf %0 : vector<8x1024xf32> to vector<8x1024xbf16>
    %c0_1 = arith.constant 0 : index
    %c0_2 = arith.constant 0 : index
    %2 = vector.load %arg3[%c0_1, %c0_2] : memref<1024x128xbf16, #tpu.memory_space<vmem>>, vector<1024x128xbf16>
    %cst = arith.constant dense<0.000000e+00> : vector<8x128xf32>
    %3 = tpu.matmul %1, %2, %cst {dimension_numbers = #tpu.dot_dimension_numbers<[1], [0], [0], [1], [0, 0, 1, 1], [], []>} : vector<8x1024xbf16>, vector<1024x128xbf16>, vector<8x128xf32> -> vector<8x128xf32>
    %c0_3 = arith.constant 0 : index
    %c0_4 = arith.constant 0 : index
    %4 = vector.load %arg4[%c0_3, %c0_4] : memref<1x128xf32, #tpu.memory_space<vmem>>, vector<1x128xf32>
    %5 = vector.broadcast %4 : vector<1x128xf32> to vector<8x128xf32>
    %6 = arith.addf %3, %5 : vector<8x128xf32>
    %cst_5 = arith.constant 0.000000e+00 : f32
    %7 = vector.broadcast %cst_5 : f32 to vector<8x128xf32>
    %8 = arith.cmpf ogt, %6, %7 : vector<8x128xf32>
    %cst_6 = arith.constant 0.00999999977 : f32
    %9 = vector.broadcast %cst_6 : f32 to vector<8x128xf32>
    %10 = arith.mulf %9, %6 : vector<8x128xf32>
    %11 = arith.select %8, %6, %10 : vector<8x128xi1>, vector<8x128xf32>
    %12 = tpu.iota {dimensions = array<i32: 0>} : vector<8x128xi32>
    %13 = tpu.iota {dimensions = array<i32: 1>} : vector<8x128xi32>
    %c8_i32 = arith.constant 8 : i32
    %14 = arith.muli %arg0, %c8_i32 : i32
    %15 = vector.broadcast %14 : i32 to vector<8x128xi32>
    %16 = arith.addi %15, %12 : vector<8x128xi32>
    %c128_i32 = arith.constant 128 : i32
    %17 = vector.broadcast %c128_i32 : i32 to vector<8x128xi32>
    %18 = arith.muli %16, %17 : vector<8x128xi32>
    %19 = arith.addi %18, %13 : vector<8x128xi32>
    %c0_7 = arith.constant 0 : index
    %20 = memref.load %arg1[%c0_7] : memref<1xi32, #tpu.memory_space<smem>>
    %c-1640531527_i32 = arith.constant -1640531527 : i32
    %21 = arith.muli %20, %c-1640531527_i32 : i32
    %22 = vector.broadcast %21 : i32 to vector<8x128xi32>
    %23 = arith.addi %19, %22 : vector<8x128xi32>
    %c16_i32 = arith.constant 16 : i32
    %24 = vector.broadcast %c16_i32 : i32 to vector<8x128xi32>
    %25 = arith.shrui %23, %24 : vector<8x128xi32>
    %26 = arith.xori %23, %25 : vector<8x128xi32>
    %c2146121005_i32 = arith.constant 2146121005 : i32
    %27 = vector.broadcast %c2146121005_i32 : i32 to vector<8x128xi32>
    %28 = arith.muli %26, %27 : vector<8x128xi32>
    %c15_i32 = arith.constant 15 : i32
    %29 = vector.broadcast %c15_i32 : i32 to vector<8x128xi32>
    %30 = arith.shrui %28, %29 : vector<8x128xi32>
    %31 = arith.xori %28, %30 : vector<8x128xi32>
    %c-2073254261_i32 = arith.constant -2073254261 : i32
    %32 = vector.broadcast %c-2073254261_i32 : i32 to vector<8x128xi32>
    %33 = arith.muli %31, %32 : vector<8x128xi32>
    %c16_i32_8 = arith.constant 16 : i32
    %34 = vector.broadcast %c16_i32_8 : i32 to vector<8x128xi32>
    %35 = arith.shrui %33, %34 : vector<8x128xi32>
    %36 = arith.xori %33, %35 : vector<8x128xi32>
    %c16777215_i32 = arith.constant 16777215 : i32
    %37 = vector.broadcast %c16777215_i32 : i32 to vector<8x128xi32>
    %38 = arith.andi %36, %37 : vector<8x128xi32>
    %c3355443_i32 = arith.constant 3355443 : i32
    %39 = vector.broadcast %c3355443_i32 : i32 to vector<8x128xi32>
    %40 = arith.cmpi uge, %38, %39 : vector<8x128xi32>
    %cst_9 = arith.constant 1.250000e+00 : f32
    %cst_10 = arith.constant 0.000000e+00 : f32
    %41 = vector.broadcast %cst_9 : f32 to vector<8x128xf32>
    %42 = vector.broadcast %cst_10 : f32 to vector<8x128xf32>
    %43 = arith.select %40, %41, %42 : vector<8x128xi1>, vector<8x128xf32>
    %44 = arith.mulf %11, %43 : vector<8x128xf32>
    %45 = arith.truncf %44 : vector<8x128xf32> to vector<8x128xbf16>
    %c0_11 = arith.constant 0 : index
    %c0_12 = arith.constant 0 : index
    %46 = vector.load %arg5[%c0_11, %c0_12] : memref<128x128xbf16, #tpu.memory_space<vmem>>, vector<128x128xbf16>
    %cst_13 = arith.constant dense<0.000000e+00> : vector<8x128xf32>
    %47 = tpu.matmul %45, %46, %cst_13 {dimension_numbers = #tpu.dot_dimension_numbers<[1], [0], [0], [1], [0, 0, 1, 1], [], []>} : vector<8x128xbf16>, vector<128x128xbf16>, vector<8x128xf32> -> vector<8x128xf32>
    %c0_14 = arith.constant 0 : index
    %c0_15 = arith.constant 0 : index
    %48 = vector.load %arg6[%c0_14, %c0_15] : memref<1x128xf32, #tpu.memory_space<vmem>>, vector<1x128xf32>
    %49 = vector.broadcast %48 : vector<1x128xf32> to vector<8x128xf32>
    %50 = arith.addf %47, %49 : vector<8x128xf32>
    %c0_16 = arith.constant 0 : index
    %c0_17 = arith.constant 0 : index
    %51 = vector.load %arg7[%c0_16, %c0_17] : memref<8x128xf32, #tpu.memory_space<vmem>>, vector<8x128xf32>
    tpu.vector_store %arg7[%c0_16, %c0_17], %50 {strides = array<i32>} : memref<8x128xf32, #tpu.memory_space<vmem>>, vector<8x128xf32>,
    return
  }
  func.func @transform_0(%arg0: i32) -> i32 {
    %c0_i32 = arith.constant 0 : i32
    %c0_i32_0 = arith.constant 0 : i32
    return %c0_i32 : i32
  }
  func.func @transform_1(%arg0: i32) -> (i32, i32) {
    %c0_i32 = arith.constant 0 : i32
    %c0_i32_0 = arith.constant 0 : i32
    return %arg0, %c0_i32 : i32, i32
  }
  func.func @transform_2(%arg0: i32) -> (i32, i32) {
    %c0_i32 = arith.constant 0 : i32
    %c0_i32_0 = arith.constant 0 : i32
    %c0_i32_1 = arith.constant 0 : i32
    return %c0_i32, %c0_i32_0 : i32, i32
  }
  func.func @transform_3(%arg0: i32) -> (i32, i32) {
    %c0_i32 = arith.constant 0 : i32
    %c0_i32_0 = arith.constant 0 : i32
    %c0_i32_1 = arith.constant 0 : i32
    return %c0_i32, %c0_i32_0 : i32, i32
  }
  func.func @transform_4(%arg0: i32) -> (i32, i32) {
    %c0_i32 = arith.constant 0 : i32
    %c0_i32_0 = arith.constant 0 : i32
    %c0_i32_1 = arith.constant 0 : i32
    return %c0_i32, %c0_i32_0 : i32, i32
  }
  func.func @transform_5(%arg0: i32) -> (i32, i32) {
    %c0_i32 = arith.constant 0 : i32
    %c0_i32_0 = arith.constant 0 : i32
    %c0_i32_1 = arith.constant 0 : i32
    return %c0_i32, %c0_i32_0 : i32, i32
  }
  func.func @transform_6(%arg0: i32) -> (i32, i32) {
    %c0_i32 = arith.constant 0 : i32
    %c0_i32_0 = arith.constant 0 : i32
    return %arg0, %c0_i32 : i32, i32
  }
}

</mosaic_0001>

<llo_original>
// kernel: tpu_custom_call.1
$region0: #{tpu_custom_call.1}
  #allocation0 [shape = 'u32[]', space=smem, size = 0x4, offset = 0x4, fixed_abs, tag = 'smem constant byte address 0x4 - core index']
  #allocation1 [shape = 'u32[72,128]{1,0:T(1,128)}', space=vmem, size = 0x9000, scoped, tag = 'internal scratch']
  #allocation2 [shape = 's32[1]{0:T(128)S(6)}', space=smem, size = 0x200, scoped, tag = 'scoped memory for tpu_custom_call.1']
  %s0 = inlined_call_operand.<no memory space> [shape: s32[1], index: 0, kind: input, shape index: {}]
  %s1 = inlined_call_operand.hbm [shape: f32[8,1024], index: 1, kind: input, shape index: {}]
  %s2 = inlined_call_operand.hbm [shape: bf16[1024,128], index: 2, kind: input, shape index: {}]
  %s3 = inlined_call_operand.vmem [shape: f32[1,128], index: 3, kind: input, shape index: {}]
  %s4 = inlined_call_operand.hbm [shape: bf16[128,128], index: 4, kind: input, shape index: {}]
  %s5 = inlined_call_operand.vmem [shape: f32[1,128], index: 5, kind: input, shape index: {}]
  %s6 = inlined_call_operand.hbm [shape: f32[8,128], index: 6, kind: output, shape index: {}]
  %s7 = sld [smem:[#allocation0]]
  $region46: #{tpu_custom_call.1} parent=0
    _
  %s9 = ssub.s32 1, %s7
  %s10 = scalar_select 0, %s9, %s7
  %11 = sst [smem:[#allocation2]] %s0
  $region1: #{tpu_custom_call.1} parent=0
    #allocation3 [shape = 'u8[32768]{0}', space=vmem, size = 0x8000, scoped, tag = 'input window, operand 1, single buffered']
    #allocation4 [shape = 's32[1]{0}', space=sflag, size = 0x4, scoped, tag = 'scoped memory for tpu_custom_call.1']
    #allocation5 [shape = 's32[1]{0}', space=sflag, size = 0x4, scoped, tag = 'scoped memory for tpu_custom_call.1']
    #allocation6 [shape = 'u8[262144]{0}', space=vmem, size = 0x40000, scoped, tag = 'input window, operand 2, single buffered']
    #allocation7 [shape = 's32[1]{0}', space=sflag, size = 0x4, scoped, tag = 'scoped memory for tpu_custom_call.1']
    #allocation8 [shape = 'u8[32768]{0}', space=vmem, size = 0x8000, scoped, tag = 'input window, operand 4, single buffered']
    #allocation9 [shape = 'u8[4096]{0}', space=vmem, size = 0x1000, scoped, tag = 'output window, operand 0, single buffered']
    %12 = vsyncpa [#allocation4], 0
    %13 = vsyncpa [#allocation7], 0
    %14 = vsyncpa [#allocation5], 0
    // Predicated region
    $region2: #{tpu_custom_call.1} parent=1 // pred_check
      _
    $region3: #{tpu_custom_call.1} parent=1 // pred_check_branch
      %16 = sbr.rel (0) target = $region5
    $region4: #{tpu_custom_call.1} parent=1 // pred_region
      _
    $region5: #{tpu_custom_call.1} parent=1 // pred_fallthru
      _
    // Predicated region
    $region6: #{tpu_custom_call.1} parent=1 // pred_check
      _
    $region7: #{tpu_custom_call.1} parent=1 // pred_check_branch
      %18 = sbr.rel (0) target = $region9
    $region8: #{tpu_custom_call.1} parent=1 // pred_region
      %20 = vsyncadd [#allocation4], 0
      %s22 = sshll.u32 %s1, 4
      %s23 = int_to_ptr.hbm [resolvable:$true] %s22
      %s24 = sshll.u32 [#allocation3], 4
      %s25 = int_to_ptr.vmem [resolvable:$true] %s24
      %27 = dma.hbm_to_vmem [thread:$0]  %s23, 1024, %s25, [#allocation4]
    $region9: #{tpu_custom_call.1} parent=1 // pred_fallthru
      _
    // Predicated region
    $region10: #{tpu_custom_call.1} parent=1 // pred_check
      _
    $region11: #{tpu_custom_call.1} parent=1 // pred_check_branch
      %29 = sbr.rel (0) target = $region13
    $region12: #{tpu_custom_call.1} parent=1 // pred_region
      %31 = vsyncadd [#allocation7], 0
      %s32 = sshll.u32 %s2, 4
      %s33 = int_to_ptr.hbm [resolvable:$true] %s32
      %s34 = sshll.u32 [#allocation6], 4
      %s35 = int_to_ptr.vmem [resolvable:$true] %s34
      %40 = dma.hbm_to_vmem [thread:$0]  %s33, 8192, %s35, [#allocation7], 64, 64, 4
    $region13: #{tpu_custom_call.1} parent=1 // pred_fallthru
      _
    // Predicated region
    $region14: #{tpu_custom_call.1} parent=1 // pred_check
      _
    $region15: #{tpu_custom_call.1} parent=1 // pred_check_branch
      %42 = sbr.rel (0) target = $region17
    $region16: #{tpu_custom_call.1} parent=1 // pred_region
      _
    $region17: #{tpu_custom_call.1} parent=1 // pred_fallthru
      _
    // Predicated region
    $region18: #{tpu_custom_call.1} parent=1 // pred_check
      _
    $region19: #{tpu_custom_call.1} parent=1 // pred_check_branch
      %44 = sbr.rel (0) target = $region21
    $region20: #{tpu_custom_call.1} parent=1 // pred_region
      %46 = vsyncadd [#allocation7], 0
      %s47 = sshll.u32 %s4, 4
      %s48 = int_to_ptr.hbm [resolvable:$true] %s47
      %s49 = sshll.u32 [#allocation8], 4
      %s50 = int_to_ptr.vmem [resolvable:$true] %s49
      %55 = dma.hbm_to_vmem [thread:$0]  %s48, 1024, %s50, [#allocation7], 64, 64, 4
    $region21: #{tpu_custom_call.1} parent=1 // pred_fallthru
      _
    // Predicated region
    $region22: #{tpu_custom_call.1} parent=1 // pred_check
      _
    $region23: #{tpu_custom_call.1} parent=1 // pred_check_branch
      %57 = sbr.rel (0) target = $region25
    $region24: #{tpu_custom_call.1} parent=1 // pred_region
      _
    $region25: #{tpu_custom_call.1} parent=1 // pred_fallthru
      _
    // Predicated region
    $region26: #{tpu_custom_call.1} parent=1 // pred_check
      _
    $region27: #{tpu_custom_call.1} parent=1 // pred_check_branch
      %59 = sbr.rel (0) target = $region29
    $region28: #{tpu_custom_call.1} parent=1 // pred_region
      %61 = dma.done [#allocation4], 1024
    $region29: #{tpu_custom_call.1} parent=1 // pred_fallthru
      _
    // Predicated region
    $region30: #{tpu_custom_call.1} parent=1 // pred_check
      _
    $region31: #{tpu_custom_call.1} parent=1 // pred_check_branch
      %63 = sbr.rel (0) target = $region33
    $region32: #{tpu_custom_call.1} parent=1 // pred_region
      %65 = dma.done [#allocation7], 8192
    $region33: #{tpu_custom_call.1} parent=1 // pred_fallthru
      _
    // Predicated region
    $region34: #{tpu_custom_call.1} parent=1 // pred_check
      _
    $region35: #{tpu_custom_call.1} parent=1 // pred_check_branch
      %67 = sbr.rel (0) target = $region37
    $region36: #{tpu_custom_call.1} parent=1 // pred_region
      %69 = dma.done [#allocation7], 1024
    $region37: #{tpu_custom_call.1} parent=1 // pred_fallthru
      _
    %v70 = vld [vmem:[#allocation3] sm:$0xff]
    %v71 = vld [vmem:[#allocation3 + $0x8] sm:$0xff]
    %v72 = vld [vmem:[#allocation3 + $0x10] sm:$0xff]
    %v73 = vld [vmem:[#allocation3 + $0x18] sm:$0xff]
    %v74 = vld [vmem:[#allocation3 + $0x20] sm:$0xff]
    %v75 = vld [vmem:[#allocation3 + $0x28] sm:$0xff]
    %v76 = vld [vmem:[#allocation3 + $0x30] sm:$0xff]
    %v77 = vld [vmem:[#allocation3 + $0x38] sm:$0xff]
    %v78 = vpack.c.bf16 %v70, %v70
    %v79 = vpack.c.bf16 %v71, %v71
    %v80 = vpack.c.bf16 %v72, %v72
    %v81 = vpack.c.bf16 %v73, %v73
    %v82 = vpack.c.bf16 %v74, %v74
    %v83 = vpack.c.bf16 %v75, %v75
    %v84 = vpack.c.bf16 %v76, %v76
    %v85 = vpack.c.bf16 %v77, %v77
    %v86 = vld [vmem:[#allocation6] sm:$0xf]
    %v87 = vld [vmem:[#allocation6 + $0x4] sm:$0xf]
    %v88 = vld [vmem:[#allocation6 + $0x8] sm:$0xf]
    %v89 = vld [vmem:[#allocation6 + $0xc] sm:$0xf]
    %v90 = vld [vmem:[#allocation6 + $0x10] sm:$0xf]
    %v91 = vld [vmem:[#allocation6 + $0x14] sm:$0xf]
    %v92 = vld [vmem:[#allocation6 + $0x18] sm:$0xf]
    %v93 = vld [vmem:[#allocation6 + $0x1c] sm:$0xf]
    %v94 = vld [vmem:[#allocation6 + $0x20] sm:$0xf]
    %v95 = vld [vmem:[#allocation6 + $0x24] sm:$0xf]
    %v96 = vld [vmem:[#allocation6 + $0x28] sm:$0xf]
    %v97 = vld [vmem:[#allocation6 + $0x2c] sm:$0xf]
    %v98 = vld [vmem:[#allocation6 + $0x30] sm:$0xf]
    %v99 = vld [vmem:[#allocation6 + $0x34] sm:$0xf]
    %v100 = vld [vmem:[#allocation6 + $0x38] sm:$0xf]
    %v101 = vld [vmem:[#allocation6 + $0x3c] sm:$0xf]
    %v102 = vld [vmem:[#allocation6 + $0x40] sm:$0xf]
    %v103 = vld [vmem:[#allocation6 + $0x44] sm:$0xf]
    %v104 = vld [vmem:[#allocation6 + $0x48] sm:$0xf]
    %v105 = vld [vmem:[#allocation6 + $0x4c] sm:$0xf]
    %v106 = vld [vmem:[#allocation6 + $0x50] sm:$0xf]
    %v107 = vld [vmem:[#allocation6 + $0x54] sm:$0xf]
    %v108 = vld [vmem:[#allocation6 + $0x58] sm:$0xf]
    %v109 = vld [vmem:[#allocation6 + $0x5c] sm:$0xf]
    %v110 = vld [vmem:[#allocation6 + $0x60] sm:$0xf]
    %v111 = vld [vmem:[#allocation6 + $0x64] sm:$0xf]
    %v112 = vld [vmem:[#allocation6 + $0x68] sm:$0xf]
    %v113 = vld [vmem:[#allocation6 + $0x6c] sm:$0xf]
    %v114 = vld [vmem:[#allocation6 + $0x70] sm:$0xf]
    %v115 = vld [vmem:[#allocation6 + $0x74] sm:$0xf]
    %v116 = vld [vmem:[#allocation6 + $0x78] sm:$0xf]
    %v117 = vld [vmem:[#allocation6 + $0x7c] sm:$0xf]
    %v118 = vld [vmem:[#allocation6 + $0x80] sm:$0xf]
    %v119 = vld [vmem:[#allocation6 + $0x84] sm:$0xf]
    %v120 = vld [vmem:[#allocation6 + $0x88] sm:$0xf]
    %v121 = vld [vmem:[#allocation6 + $0x8c] sm:$0xf]
    %v122 = vld [vmem:[#allocation6 + $0x90] sm:$0xf]
    %v123 = vld [vmem:[#allocation6 + $0x94] sm:$0xf]
    %v124 = vld [vmem:[#allocation6 + $0x98] sm:$0xf]
    %v125 = vld [vmem:[#allocation6 + $0x9c] sm:$0xf]
    %v126 = vld [vmem:[#allocation6 + $0xa0] sm:$0xf]
    %v127 = vld [vmem:[#allocation6 + $0xa4] sm:$0xf]
    %v128 = vld [vmem:[#allocation6 + $0xa8] sm:$0xf]
    %v129 = vld [vmem:[#allocation6 + $0xac] sm:$0xf]
    %v130 = vld [vmem:[#allocation6 + $0xb0] sm:$0xf]
    %v131 = vld [vmem:[#allocation6 + $0xb4] sm:$0xf]
    %v132 = vld [vmem:[#allocation6 + $0xb8] sm:$0xf]
    %v133 = vld [vmem:[#allocation6 + $0xbc] sm:$0xf]
    %v134 = vld [vmem:[#allocation6 + $0xc0] sm:$0xf]
    %v135 = vld [vmem:[#allocation6 + $0xc4] sm:$0xf]
    %v136 = vld [vmem:[#allocation6 + $0xc8] sm:$0xf]
    %v137 = vld [vmem:[#allocation6 + $0xcc] sm:$0xf]
    %v138 = vld [vmem:[#allocation6 + $0xd0] sm:$0xf]
    %v139 = vld [vmem:[#allocation6 + $0xd4] sm:$0xf]
    %v140 = vld [vmem:[#allocation6 + $0xd8] sm:$0xf]
    %v141 = vld [vmem:[#allocation6 + $0xdc] sm:$0xf]
    %v142 = vld [vmem:[#allocation6 + $0xe0] sm:$0xf]
    %v143 = vld [vmem:[#allocation6 + $0xe4] sm:$0xf]
    %v144 = vld [vmem:[#allocation6 + $0xe8] sm:$0xf]
    %v145 = vld [vmem:[#allocation6 + $0xec] sm:$0xf]
    %v146 = vld [vmem:[#allocation6 + $0xf0] sm:$0xf]
    %v147 = vld [vmem:[#allocation6 + $0xf4] sm:$0xf]
    %v148 = vld [vmem:[#allocation6 + $0xf8] sm:$0xf]
    %v149 = vld [vmem:[#allocation6 + $0xfc] sm:$0xf]
    %v150 = vld [vmem:[#allocation6 + $0x100] sm:$0xf]
    %v151 = vld [vmem:[#allocation6 + $0x104] sm:$0xf]
    %v152 = vld [vmem:[#allocation6 + $0x108] sm:$0xf]
    %v153 = vld [vmem:[#allocation6 + $0x10c] sm:$0xf]
    %v154 = vld [vmem:[#allocation6 + $0x110] sm:$0xf]
    %v155 = vld [vmem:[#allocation6 + $0x114] sm:$0xf]
    %v156 = vld [vmem:[#allocation6 + $0x118] sm:$0xf]
    %v157 = vld [vmem:[#allocation6 + $0x11c] sm:$0xf]
    %v158 = vld [vmem:[#allocation6 + $0x120] sm:$0xf]
    %v159 = vld [vmem:[#allocation6 + $0x124] sm:$0xf]
    %v160 = vld [vmem:[#allocation6 + $0x128] sm:$0xf]
    %v161 = vld [vmem:[#allocation6 + $0x12c] sm:$0xf]
    %v162 = vld [vmem:[#allocation6 + $0x130] sm:$0xf]
    %v163 = vld [vmem:[#allocation6 + $0x134] sm:$0xf]
    %v164 = vld [vmem:[#allocation6 + $0x138] sm:$0xf]
    %v165 = vld [vmem:[#allocation6 + $0x13c] sm:$0xf]
    %v166 = vld [vmem:[#allocation6 + $0x140] sm:$0xf]
    %v167 = vld [vmem:[#allocation6 + $0x144] sm:$0xf]
    %v168 = vld [vmem:[#allocation6 + $0x148] sm:$0xf]
    %v169 = vld [vmem:[#allocation6 + $0x14c] sm:$0xf]
    %v170 = vld [vmem:[#allocation6 + $0x150] sm:$0xf]
    %v171 = vld [vmem:[#allocation6 + $0x154] sm:$0xf]
    %v172 = vld [vmem:[#allocation6 + $0x158] sm:$0xf]
    %v173 = vld [vmem:[#allocation6 + $0x15c] sm:$0xf]
    %v174 = vld [vmem:[#allocation6 + $0x160] sm:$0xf]
    %v175 = vld [vmem:[#allocation6 + $0x164] sm:$0xf]
    %v176 = vld [vmem:[#allocation6 + $0x168] sm:$0xf]
    %v177 = vld [vmem:[#allocation6 + $0x16c] sm:$0xf]
    %v178 = vld [vmem:[#allocation6 + $0x170] sm:$0xf]
    %v179 = vld [vmem:[#allocation6 + $0x174] sm:$0xf]
    %v180 = vld [vmem:[#allocation6 + $0x178] sm:$0xf]
    %v181 = vld [vmem:[#allocation6 + $0x17c] sm:$0xf]
    %v182 = vld [vmem:[#allocation6 + $0x180] sm:$0xf]
    %v183 = vld [vmem:[#allocation6 + $0x184] sm:$0xf]
    %v184 = vld [vmem:[#allocation6 + $0x188] sm:$0xf]
    %v185 = vld [vmem:[#allocation6 + $0x18c] sm:$0xf]
    %v186 = vld [vmem:[#allocation6 + $0x190] sm:$0xf]
    %v187 = vld [vmem:[#allocation6 + $0x194] sm:$0xf]
    %v188 = vld [vmem:[#allocation6 + $0x198] sm:$0xf]
    %v189 = vld [vmem:[#allocation6 + $0x19c] sm:$0xf]
    %v190 = vld [vmem:[#allocation6 + $0x1a0] sm:$0xf]
    %v191 = vld [vmem:[#allocation6 + $0x1a4] sm:$0xf]
    %v192 = vld [vmem:[#allocation6 + $0x1a8] sm:$0xf]
    %v193 = vld [vmem:[#allocation6 + $0x1ac] sm:$0xf]
    %v194 = vld [vmem:[#allocation6 + $0x1b0] sm:$0xf]
    %v195 = vld [vmem:[#allocation6 + $0x1b4] sm:$0xf]
    %v196 = vld [vmem:[#allocation6 + $0x1b8] sm:$0xf]
    %v197 = vld [vmem:[#allocation6 + $0x1bc] sm:$0xf]
    %v198 = vld [vmem:[#allocation6 + $0x1c0] sm:$0xf]
    %v199 = vld [vmem:[#allocation6 + $0x1c4] sm:$0xf]
    %v200 = vld [vmem:[#allocation6 + $0x1c8] sm:$0xf]
    %v201 = vld [vmem:[#allocation6 + $0x1cc] sm:$0xf]
    %v202 = vld [vmem:[#allocation6 + $0x1d0] sm:$0xf]
    %v203 = vld [vmem:[#allocation6 + $0x1d4] sm:$0xf]
    %v204 = vld [vmem:[#allocation6 + $0x1d8] sm:$0xf]
    %v205 = vld [vmem:[#allocation6 + $0x1dc] sm:$0xf]
    %v206 = vld [vmem:[#allocation6 + $0x1e0] sm:$0xf]
    %v207 = vld [vmem:[#allocation6 + $0x1e4] sm:$0xf]
    %v208 = vld [vmem:[#allocation6 + $0x1e8] sm:$0xf]
    %v209 = vld [vmem:[#allocation6 + $0x1ec] sm:$0xf]
    %v210 = vld [vmem:[#allocation6 + $0x1f0] sm:$0xf]
    %v211 = vld [vmem:[#allocation6 + $0x1f4] sm:$0xf]
    %v212 = vld [vmem:[#allocation6 + $0x1f8] sm:$0xf]
    %v213 = vld [vmem:[#allocation6 + $0x1fc] sm:$0xf]
    %v214 = vld [vmem:[%s3] sm:$0x1]
    %v216 = vperm.slane %v214, 0
    %v346 = vunpack.c.l.b16 %v86
    %v347 = vunpack.c.l.b16 %v87
    %v348 = vunpack.c.l.b16 %v88
    %v349 = vunpack.c.l.b16 %v89
    %v350 = vunpack.c.l.b16 %v90
    %v351 = vunpack.c.l.b16 %v91
    %v352 = vunpack.c.l.b16 %v92
    %v353 = vunpack.c.l.b16 %v93
    %v354 = vunpack.c.l.b16 %v94
    %v355 = vunpack.c.l.b16 %v95
    %v356 = vunpack.c.l.b16 %v96
    %v357 = vunpack.c.l.b16 %v97
    %v358 = vunpack.c.l.b16 %v98
    %v359 = vunpack.c.l.b16 %v99
    %v360 = vunpack.c.l.b16 %v100
    %v361 = vunpack.c.l.b16 %v101
    %v362 = vunpack.c.l.b16 %v102
    %v363 = vunpack.c.l.b16 %v103
    %v364 = vunpack.c.l.b16 %v104
    %v365 = vunpack.c.l.b16 %v105
    %v366 = vunpack.c.l.b16 %v106
    %v367 = vunpack.c.l.b16 %v107
    %v368 = vunpack.c.l.b16 %v108
    %v369 = vunpack.c.l.b16 %v109
    %v370 = vunpack.c.l.b16 %v110
    %v371 = vunpack.c.l.b16 %v111
    %v372 = vunpack.c.l.b16 %v112
    %v373 = vunpack.c.l.b16 %v113
    %v374 = vunpack.c.l.b16 %v114
    %v375 = vunpack.c.l.b16 %v115
    %v376 = vunpack.c.l.b16 %v116
    %v377 = vunpack.c.l.b16 %v117
    %v378 = vunpack.c.l.b16 %v118
    %v379 = vunpack.c.l.b16 %v119
    %v380 = vunpack.c.l.b16 %v120
    %v381 = vunpack.c.l.b16 %v121
    %v382 = vunpack.c.l.b16 %v122
    %v383 = vunpack.c.l.b16 %v123
    %v384 = vunpack.c.l.b16 %v124
    %v385 = vunpack.c.l.b16 %v125
    %v386 = vunpack.c.l.b16 %v126
    %v387 = vunpack.c.l.b16 %v127
    %v388 = vunpack.c.l.b16 %v128
    %v389 = vunpack.c.l.b16 %v129
    %v390 = vunpack.c.l.b16 %v130
    %v391 = vunpack.c.l.b16 %v131
    %v392 = vunpack.c.l.b16 %v132
    %v393 = vunpack.c.l.b16 %v133
    %v394 = vunpack.c.l.b16 %v134
    %v395 = vunpack.c.l.b16 %v135
    %v396 = vunpack.c.l.b16 %v136
    %v397 = vunpack.c.l.b16 %v137
    %v398 = vunpack.c.l.b16 %v138
    %v399 = vunpack.c.l.b16 %v139
    %v400 = vunpack.c.l.b16 %v140
    %v401 = vunpack.c.l.b16 %v141
    %v402 = vunpack.c.l.b16 %v142
    %v403 = vunpack.c.l.b16 %v143
    %v404 = vunpack.c.l.b16 %v144
    %v405 = vunpack.c.l.b16 %v145
    %v406 = vunpack.c.l.b16 %v146
    %v407 = vunpack.c.l.b16 %v147
    %v408 = vunpack.c.l.b16 %v148
    %v409 = vunpack.c.l.b16 %v149
    %v410 = vunpack.c.l.b16 %v150
    %v411 = vunpack.c.l.b16 %v151
    %v412 = vunpack.c.l.b16 %v152
    %v413 = vunpack.c.l.b16 %v153
    %v414 = vunpack.c.l.b16 %v154
    %v415 = vunpack.c.l.b16 %v155
    %v416 = vunpack.c.l.b16 %v156
    %v417 = vunpack.c.l.b16 %v157
    %v418 = vunpack.c.l.b16 %v158
    %v419 = vunpack.c.l.b16 %v159
    %v420 = vunpack.c.l.b16 %v160
    %v421 = vunpack.c.l.b16 %v161
    %v422 = vunpack.c.l.b16 %v162
    %v423 = vunpack.c.l.b16 %v163
    %v424 = vunpack.c.l.b16 %v164
    %v425 = vunpack.c.l.b16 %v165
    %v426 = vunpack.c.l.b16 %v166
    %v427 = vunpack.c.l.b16 %v167
    %v428 = vunpack.c.l.b16 %v168
    %v429 = vunpack.c.l.b16 %v169
    %v430 = vunpack.c.l.b16 %v170
    %v431 = vunpack.c.l.b16 %v171
    %v432 = vunpack.c.l.b16 %v172
    %v433 = vunpack.c.l.b16 %v173
    %v434 = vunpack.c.l.b16 %v174
    %v435 = vunpack.c.l.b16 %v175
    %v436 = vunpack.c.l.b16 %v176
    %v437 = vunpack.c.l.b16 %v177
    %v438 = vunpack.c.l.b16 %v178
    %v439 = vunpack.c.l.b16 %v179
    %v440 = vunpack.c.l.b16 %v180
    %v441 = vunpack.c.l.b16 %v181
    %v442 = vunpack.c.l.b16 %v182
    %v443 = vunpack.c.l.b16 %v183
    %v444 = vunpack.c.l.b16 %v184
    %v445 = vunpack.c.l.b16 %v185
    %v446 = vunpack.c.l.b16 %v186
    %v447 = vunpack.c.l.b16 %v187
    %v448 = vunpack.c.l.b16 %v188
    %v449 = vunpack.c.l.b16 %v189
    %v450 = vunpack.c.l.b16 %v190
    %v451 = vunpack.c.l.b16 %v191
    %v452 = vunpack.c.l.b16 %v192
    %v453 = vunpack.c.l.b16 %v193
    %v454 = vunpack.c.l.b16 %v194
    %v455 = vunpack.c.l.b16 %v195
    %v456 = vunpack.c.l.b16 %v196
    %v457 = vunpack.c.l.b16 %v197
    %v458 = vunpack.c.l.b16 %v198
    %v459 = vunpack.c.l.b16 %v199
    %v460 = vunpack.c.l.b16 %v200
    %v461 = vunpack.c.l.b16 %v201
    %v462 = vunpack.c.l.b16 %v202
    %v463 = vunpack.c.l.b16 %v203
    %v464 = vunpack.c.l.b16 %v204
    %v465 = vunpack.c.l.b16 %v205
    %v466 = vunpack.c.l.b16 %v206
    %v467 = vunpack.c.l.b16 %v207
    %v468 = vunpack.c.l.b16 %v208
    %v469 = vunpack.c.l.b16 %v209
    %v470 = vunpack.c.l.b16 %v210
    %v471 = vunpack.c.l.b16 %v211
    %v472 = vunpack.c.l.b16 %v212
    %v473 = vunpack.c.l.b16 %v213
    %v474 = vpack.c.b16 %v347, %v346
    %v475 = vpack.c.b16 %v349, %v348
    %v476 = vpack.c.b16 %v351, %v350
    %v477 = vpack.c.b16 %v353, %v352
    %v478 = vpack.c.b16 %v355, %v354
    %v479 = vpack.c.b16 %v357, %v356
    %v480 = vpack.c.b16 %v359, %v358
    %v481 = vpack.c.b16 %v361, %v360
    %v482 = vpack.c.b16 %v363, %v362
    %v483 = vpack.c.b16 %v365, %v364
    %v484 = vpack.c.b16 %v367, %v366
    %v485 = vpack.c.b16 %v369, %v368
    %v486 = vpack.c.b16 %v371, %v370
    %v487 = vpack.c.b16 %v373, %v372
    %v488 = vpack.c.b16 %v375, %v374
    %v489 = vpack.c.b16 %v377, %v376
    %v490 = vpack.c.b16 %v379, %v378
    %v491 = vpack.c.b16 %v381, %v380
    %v492 = vpack.c.b16 %v383, %v382
    %v493 = vpack.c.b16 %v385, %v384
    %v494 = vpack.c.b16 %v387, %v386
    %v495 = vpack.c.b16 %v389, %v388
    %v496 = vpack.c.b16 %v391, %v390
    %v497 = vpack.c.b16 %v393, %v392
    %v498 = vpack.c.b16 %v395, %v394
    %v499 = vpack.c.b16 %v397, %v396
    %v500 = vpack.c.b16 %v399, %v398
    %v501 = vpack.c.b16 %v401, %v400
    %v502 = vpack.c.b16 %v403, %v402
    %v503 = vpack.c.b16 %v405, %v404
    %v504 = vpack.c.b16 %v407, %v406
    %v505 = vpack.c.b16 %v409, %v408
    %v506 = vpack.c.b16 %v411, %v410
    %v507 = vpack.c.b16 %v413, %v412
    %v508 = vpack.c.b16 %v415, %v414
    %v509 = vpack.c.b16 %v417, %v416
    %v510 = vpack.c.b16 %v419, %v418
    %v511 = vpack.c.b16 %v421, %v420
    %v512 = vpack.c.b16 %v423, %v422
    %v513 = vpack.c.b16 %v425, %v424
    %v514 = vpack.c.b16 %v427, %v426
    %v515 = vpack.c.b16 %v429, %v428
    %v516 = vpack.c.b16 %v431, %v430
    %v517 = vpack.c.b16 %v433, %v432
    %v518 = vpack.c.b16 %v435, %v434
    %v519 = vpack.c.b16 %v437, %v436
    %v520 = vpack.c.b16 %v439, %v438
    %v521 = vpack.c.b16 %v441, %v440
    %v522 = vpack.c.b16 %v443, %v442
    %v523 = vpack.c.b16 %v445, %v444
    %v524 = vpack.c.b16 %v447, %v446
    %v525 = vpack.c.b16 %v449, %v448
    %v526 = vpack.c.b16 %v451, %v450
    %v527 = vpack.c.b16 %v453, %v452
    %v528 = vpack.c.b16 %v455, %v454
    %v529 = vpack.c.b16 %v457, %v456
    %v530 = vpack.c.b16 %v459, %v458
    %v531 = vpack.c.b16 %v461, %v460
    %v532 = vpack.c.b16 %v463, %v462
    %v533 = vpack.c.b16 %v465, %v464
    %v534 = vpack.c.b16 %v467, %v466
    %v535 = vpack.c.b16 %v469, %v468
    %v536 = vpack.c.b16 %v471, %v470
    %v537 = vpack.c.b16 %v473, %v472
    %602 = vmatpush.bf16.msra.mxu0 %v481
    %603 = vmatpush.bf16.msra.mxu0 %v480
    %604 = vmatpush.bf16.msra.mxu0 %v479
    %605 = vmatpush.bf16.msra.mxu0 %v478
    %606 = vmatpush.bf16.msra.mxu0 %v477
    %607 = vmatpush.bf16.msra.mxu0 %v476
    %608 = vmatpush.bf16.msra.mxu0 %v475
    %609 = vmatpush.bf16.msra.mxu0 %v474
    %610 = vmatmul.bf16.gmra.mxu0 %v78
    %v611 = vpop.f32.mrf.mxu0
    %v612 = vadd.f32 %v216, %v611
    %v613 = vpop.f32.mrf.mxu0
    %614 = vdwg.mxu0
    %615 = vmatpush.bf16.msra.mxu0 %v489
    %616 = vmatpush.bf16.msra.mxu0 %v488
    %617 = vmatpush.bf16.msra.mxu0 %v487
    %618 = vmatpush.bf16.msra.mxu0 %v486
    %619 = vmatpush.bf16.msra.mxu0 %v485
    %620 = vmatpush.bf16.msra.mxu0 %v484
    %621 = vmatpush.bf16.msra.mxu0 %v483
    %622 = vmatpush.bf16.msra.mxu0 %v482
    %623 = vmatmul.bf16.gmra.mxu0 %v79
    %v624 = vpop.f32.mrf.mxu0
    %v625 = vadd.f32 %v612, %v624
    %v626 = vpop.f32.mrf.mxu0
    %627 = vdwg.mxu0
    %628 = vmatpush.bf16.msra.mxu0 %v497
    %629 = vmatpush.bf16.msra.mxu0 %v496
    %630 = vmatpush.bf16.msra.mxu0 %v495
    %631 = vmatpush.bf16.msra.mxu0 %v494
    %632 = vmatpush.bf16.msra.mxu0 %v493
    %633 = vmatpush.bf16.msra.mxu0 %v492
    %634 = vmatpush.bf16.msra.mxu0 %v491
    %635 = vmatpush.bf16.msra.mxu0 %v490
    %636 = vmatmul.bf16.gmra.mxu0 %v80
    %v637 = vpop.f32.mrf.mxu0
    %v638 = vadd.f32 %v625, %v637
    %v639 = vpop.f32.mrf.mxu0
    %640 = vdwg.mxu0
    %641 = vmatpush.bf16.msra.mxu0 %v505
    %642 = vmatpush.bf16.msra.mxu0 %v504
    %643 = vmatpush.bf16.msra.mxu0 %v503
    %644 = vmatpush.bf16.msra.mxu0 %v502
    %645 = vmatpush.bf16.msra.mxu0 %v501
    %646 = vmatpush.bf16.msra.mxu0 %v500
    %647 = vmatpush.bf16.msra.mxu0 %v499
    %648 = vmatpush.bf16.msra.mxu0 %v498
    %649 = vmatmul.bf16.gmra.mxu0 %v81
    %v650 = vpop.f32.mrf.mxu0
    %v651 = vadd.f32 %v638, %v650
    %v652 = vpop.f32.mrf.mxu0
    %653 = vdwg.mxu0
    %654 = vmatpush.bf16.msra.mxu0 %v513
    %655 = vmatpush.bf16.msra.mxu0 %v512
    %656 = vmatpush.bf16.msra.mxu0 %v511
    %657 = vmatpush.bf16.msra.mxu0 %v510
    %658 = vmatpush.bf16.msra.mxu0 %v509
    %659 = vmatpush.bf16.msra.mxu0 %v508
    %660 = vmatpush.bf16.msra.mxu0 %v507
    %661 = vmatpush.bf16.msra.mxu0 %v506
    %662 = vmatmul.bf16.gmra.mxu0 %v82
    %v663 = vpop.f32.mrf.mxu0
    %v664 = vadd.f32 %v651, %v663
    %v665 = vpop.f32.mrf.mxu0
    %666 = vdwg.mxu0
    %667 = vmatpush.bf16.msra.mxu0 %v521
    %668 = vmatpush.bf16.msra.mxu0 %v520
    %669 = vmatpush.bf16.msra.mxu0 %v519
    %670 = vmatpush.bf16.msra.mxu0 %v518
    %671 = vmatpush.bf16.msra.mxu0 %v517
    %672 = vmatpush.bf16.msra.mxu0 %v516
    %673 = vmatpush.bf16.msra.mxu0 %v515
    %674 = vmatpush.bf16.msra.mxu0 %v514
    %675 = vmatmul.bf16.gmra.mxu0 %v83
    %v676 = vpop.f32.mrf.mxu0
    %v677 = vadd.f32 %v664, %v676
    %v678 = vpop.f32.mrf.mxu0
    %679 = vdwg.mxu0
    %680 = vmatpush.bf16.msra.mxu0 %v529
    %681 = vmatpush.bf16.msra.mxu0 %v528
    %682 = vmatpush.bf16.msra.mxu0 %v527
    %683 = vmatpush.bf16.msra.mxu0 %v526
    %684 = vmatpush.bf16.msra.mxu0 %v525
    %685 = vmatpush.bf16.msra.mxu0 %v524
    %686 = vmatpush.bf16.msra.mxu0 %v523
    %687 = vmatpush.bf16.msra.mxu0 %v522
    %688 = vmatmul.bf16.gmra.mxu0 %v84
    %v689 = vpop.f32.mrf.mxu0
    %v690 = vadd.f32 %v677, %v689
    %v691 = vpop.f32.mrf.mxu0
    %692 = vdwg.mxu0
    %693 = vmatpush.bf16.msra.mxu0 %v537
    %694 = vmatpush.bf16.msra.mxu0 %v536
    %695 = vmatpush.bf16.msra.mxu0 %v535
    %696 = vmatpush.bf16.msra.mxu0 %v534
    %697 = vmatpush.bf16.msra.mxu0 %v533
    %698 = vmatpush.bf16.msra.mxu0 %v532
    %699 = vmatpush.bf16.msra.mxu0 %v531
    %700 = vmatpush.bf16.msra.mxu0 %v530
    %701 = vmatmul.bf16.gmra.mxu0 %v85
    %v702 = vpop.f32.mrf.mxu0
    %v703 = vadd.f32 %v690, %v702
    %v704 = vpop.f32.mrf.mxu0
    %705 = vdwg.mxu0
    %vm706 = vcmp.gt.f32.partialorder %v703, 0.0
    %v707 = vmul.f32 %v703, 0.01
    %v708 = vsel %vm706, %v703, %v707
    %v709 = vlaneseq
    %v710 = vshrl.u32 %v709, 7
    %v711 = vlaneseq
    %v712 = vand.u32 %v711, 127
    %s713 = smul.u32 0, 8
    %v714 = vstv %s713
    %v715 = vadd.s32 %v714, %v710
    %v716 = vmul.u32 %v715, 128
    %v717 = vadd.s32 %v716, %v712
    %s718 = sld [smem:[#allocation2]]
    %s719 = smul.u32 %s718, 2654435769
    %v720 = vstv %s719
    %v721 = vadd.s32 %v717, %v720
    %v722 = vshrl.u32 %v721, 16
    %v723 = vxor.u32 %v721, %v722
    %v724 = vmul.u32 %v723, 2146121005
    %v725 = vshrl.u32 %v724, 15
    %v726 = vxor.u32 %v724, %v725
    %v727 = vmul.u32 %v726, 2221713035
    %v728 = vshrl.u32 %v727, 16
    %v729 = vxor.u32 %v727, %v728
    %v730 = vand.u32 %v729, 16777215
    %v731 = vadd.s32 %v730, 2147483648
    %vm733 = vcmp.ge.s32.totalorder %v731, 2150839091
    %v734 = vsel %vm733, 1.25, 0.0
    %v735 = vmul.f32 %v708, %v734
    %v736 = vpack.c.bf16 %v735, %v735
    %v737 = vld [vmem:[#allocation8] sm:$0xf]
    %v738 = vld [vmem:[#allocation8 + $0x4] sm:$0xf]
    %v739 = vld [vmem:[#allocation8 + $0x8] sm:$0xf]
    %v740 = vld [vmem:[#allocation8 + $0xc] sm:$0xf]
    %v741 = vld [vmem:[#allocation8 + $0x10] sm:$0xf]
    %v742 = vld [vmem:[#allocation8 + $0x14] sm:$0xf]
    %v743 = vld [vmem:[#allocation8 + $0x18] sm:$0xf]
    %v744 = vld [vmem:[#allocation8 + $0x1c] sm:$0xf]
    %v745 = vld [vmem:[#allocation8 + $0x20] sm:$0xf]
    %v746 = vld [vmem:[#allocation8 + $0x24] sm:$0xf]
    %v747 = vld [vmem:[#allocation8 + $0x28] sm:$0xf]
    %v748 = vld [vmem:[#allocation8 + $0x2c] sm:$0xf]
    %v749 = vld [vmem:[#allocation8 + $0x30] sm:$0xf]
    %v750 = vld [vmem:[#allocation8 + $0x34] sm:$0xf]
    %v751 = vld [vmem:[#allocation8 + $0x38] sm:$0xf]
    %v752 = vld [vmem:[#allocation8 + $0x3c] sm:$0xf]
    %v753 = vld [vmem:[%s5] sm:$0x1]
    %v755 = vperm.slane %v753, 0
    %v773 = vunpack.c.l.b16 %v737
    %v774 = vunpack.c.l.b16 %v738
    %v775 = vunpack.c.l.b16 %v739
    %v776 = vunpack.c.l.b16 %v740
    %v777 = vunpack.c.l.b16 %v741
    %v778 = vunpack.c.l.b16 %v742
    %v779 = vunpack.c.l.b16 %v743
    %v780 = vunpack.c.l.b16 %v744
    %v781 = vunpack.c.l.b16 %v745
    %v782 = vunpack.c.l.b16 %v746
    %v783 = vunpack.c.l.b16 %v747
    %v784 = vunpack.c.l.b16 %v748
    %v785 = vunpack.c.l.b16 %v749
    %v786 = vunpack.c.l.b16 %v750
    %v787 = vunpack.c.l.b16 %v751
    %v788 = vunpack.c.l.b16 %v752
    %v789 = vpack.c.b16 %v774, %v773
    %v790 = vpack.c.b16 %v776, %v775
    %v791 = vpack.c.b16 %v778, %v777
    %v792 = vpack.c.b16 %v780, %v779
    %v793 = vpack.c.b16 %v782, %v781
    %v794 = vpack.c.b16 %v784, %v783
    %v795 = vpack.c.b16 %v786, %v785
    %v796 = vpack.c.b16 %v788, %v787
    %805 = vmatpush.bf16.msra.mxu0 %v796
    %806 = vmatpush.bf16.msra.mxu0 %v795
    %807 = vmatpush.bf16.msra.mxu0 %v794
    %808 = vmatpush.bf16.msra.mxu0 %v793
    %809 = vmatpush.bf16.msra.mxu0 %v792
    %810 = vmatpush.bf16.msra.mxu0 %v791
    %811 = vmatpush.bf16.msra.mxu0 %v790
    %812 = vmatpush.bf16.msra.mxu0 %v789
    %813 = vmatmul.bf16.gmra.mxu0 %v736
    %v814 = vpop.f32.mrf.mxu0
    %v815 = vadd.f32 %v755, %v814
    %v816 = vpop.f32.mrf.mxu0
    %817 = vdwg.mxu0
    %818 = vst [vmem:[#allocation9] sm:$0xff] %v815
    // Predicated region
    $region38: #{tpu_custom_call.1} parent=1 // pred_check
      _
    $region39: #{tpu_custom_call.1} parent=1 // pred_check_branch
      %820 = sbr.rel (0) target = $region41
    $region40: #{tpu_custom_call.1} parent=1 // pred_region
      %822 = vsyncadd [#allocation5], 0
      %s824 = sshll.u32 [#allocation9], 4
      %s825 = int_to_ptr.vmem [resolvable:$true] %s824
      %s826 = sshll.u32 %s6, 4
      %s827 = int_to_ptr.hbm [resolvable:$true] %s826
      %829 = dma.vmem_to_hbm [thread:$0]  %s825, 128, %s827, [#allocation5]
    $region41: #{tpu_custom_call.1} parent=1 // pred_fallthru
      _
    // Predicated region
    $region42: #{tpu_custom_call.1} parent=1 // pred_check
      _
    $region43: #{tpu_custom_call.1} parent=1 // pred_check_branch
      %831 = sbr.rel (0) target = $region45
    $region44: #{tpu_custom_call.1} parent=1 // pred_region
      %833 = dma.done [#allocation5], 128
    $region45: #{tpu_custom_call.1} parent=1 // pred_fallthru
      _
    %834 = vsyncpa [#allocation4], 1
    %835 = vsyncpa [#allocation7], 1
    %836 = vsyncpa [#allocation5], 1

</llo_original>
